<compile_context>
chip_gen: v7x
topology: tpu7x:2x2x1
jax: 0.10.0
libtpu: 0.0.40
codegen_flags: <defaults>
</compile_context>

<pallas_src>
import jax
import jax.numpy as jnp
from jax.experimental import pallas as pl
from jax.experimental.pallas import tpu as pltpu

# ----------------------------- configuration -----------------------------
BATCH = 2
SEQ = 8            # sequence length (<= CONTEXT, so ALiBi M is cropped)
DIM = 32           # model dim
DIM_HEAD = 8
N_HEADS = 4
INNER = DIM_HEAD * N_HEADS
CONTEXT = 32       # Alibi context_x (context_y=None -> self-attention)
LN_EPS = 1e-5
NEG_INF = -1e30    # mask for cross-batch logits (exp underflows to exactly 0 in f32)
OUT_PAD = ((DIM + 127) // 128) * 128   # lane-dense padded output width (=128)


# ----------------------------- ALiBi matrix (glue, runs once) -----------------------------
def make_alibi_M(context: int, n_heads: int) -> jnp.ndarray:
    """Replicates Alibi._create_M for the self-attention (square) case.
    M[h, i, j] = -|i - j| * 2**(-8 / (n_heads - h)).  Shape (n_heads, context, context)."""
    idx = jnp.arange(context)
    base = -jnp.abs(idx[:, None] - idx[None, :]).astype(jnp.float32)
    n_sequence = jnp.arange(n_heads, 0, -1).astype(jnp.float32)   # [H, H-1, ..., 1]
    head_scalars = 2.0 ** (-8.0 / n_sequence)
    return base[None, :, :] * head_scalars[:, None, None]


# ----------------------------- one-time parameter prep (wrapper side) -----------------------------
def prepare_params(gamma, beta, wq, wk, wv, wo):
    """Fuse QKV weights (1/sqrt(dh) folded into Q columns, LN gamma folded into rows),
    precompute the LN-beta row bias, split+pad Wo per head to 128 lanes (bf16), and
    build the block-diagonal (per-batch) ALiBi bias of shape (H, B*N, B*N) in f32."""
    scale = 1.0 / (DIM_HEAD ** 0.5)
    w_qkv = jnp.concatenate([wq * scale, wk, wv], axis=1)            # (D, 3*INNER) f32
    qkv_bias = (beta @ w_qkv).reshape(1, 3 * INNER)                  # (1, 3*INNER) f32
    w_qkv = (gamma.reshape(DIM, 1) * w_qkv).astype(jnp.bfloat16)     # gamma folded, bf16

    wo_pad = jnp.zeros((INNER, OUT_PAD), jnp.float32).at[:, :DIM].set(wo)
    wo_heads = wo_pad.reshape(N_HEADS, DIM_HEAD, OUT_PAD).astype(jnp.bfloat16)

    m_crop = make_alibi_M(CONTEXT, N_HEADS)[:, :SEQ, :SEQ]           # (H, N, N)
    block_mask = jnp.kron(jnp.eye(BATCH, dtype=jnp.float32),
                          jnp.ones((SEQ, SEQ), jnp.float32))         # (B*N, B*N)
    bias = jnp.where(block_mask[None] > 0.5,
                     jnp.tile(m_crop, (1, BATCH, BATCH)),
                     NEG_INF).astype(jnp.float32)                    # (H, B*N, B*N), keep f32
    return w_qkv, qkv_bias, wo_heads, bias


# ----------------------------- Pallas kernel -----------------------------
def attention_kernel(x_ref, qkvb_ref, wqkv_ref, wo_ref, bias_ref, o_ref):
    x = x_ref[...]                                    # (B*N, D) f32

    # --- LayerNorm stats only (affine folded into the weights at prep time) ---
    mean = jnp.mean(x, axis=-1, keepdims=True)
    xc = x - mean
    var = jnp.mean(xc * xc, axis=-1, keepdims=True)
    xn = xc * jax.lax.rsqrt(var + LN_EPS)             # f32 normalized rows

    # --- fused QKV projection: bf16 MXU operands, f32 accumulate, + folded LN-beta bias ---
    qkv = jnp.dot(xn.astype(jnp.bfloat16), wqkv_ref[...],
                  preferred_element_type=jnp.float32) + qkvb_ref[...]   # (B*N, 3*INNER) f32
    qkv = qkv.astype(jnp.bfloat16)                    # one cheap cast; bf16 MXU operands below

    # --- per-head: scores over ALL batch rows (cross-batch logits masked by the bias),
    #     fused bias + softmax in vregs, (p@v) and output projection accumulated directly ---
    dn = (((1,), (1,)), ((), ()))     # contract last dims: q_h @ k_h^T without a transpose op
    acc = None
    for h in range(N_HEADS):
        q_h = qkv[:, h * DIM_HEAD:(h + 1) * DIM_HEAD]                         # (B*N, dh) bf16
        k_h = qkv[:, INNER + h * DIM_HEAD: INNER + (h + 1) * DIM_HEAD]        # (B*N, dh) bf16
        v_h = qkv[:, 2 * INNER + h * DIM_HEAD: 2 * INNER + (h + 1) * DIM_HEAD]

        s = jax.lax.dot_general(q_h, k_h, dn,
                                preferred_element_type=jnp.float32)           # (B*N, B*N) f32
        s = s + bias_ref[h]                            # ALiBi + block-diagonal batch mask (f32)
        s = s - jnp.max(s, axis=-1, keepdims=True)
        p = jnp.exp(s)
        p = p * pl.reciprocal(jnp.sum(p, axis=-1, keepdims=True), approx=True)  # EUP slot

        o_h = jnp.dot(p.astype(jnp.bfloat16), v_h,
                      preferred_element_type=jnp.float32)                     # (B*N, dh) f32
        contrib = jnp.dot(o_h.astype(jnp.bfloat16), wo_ref[h],
                          preferred_element_type=jnp.float32)                 # (B*N, OUT_PAD)
        acc = contrib if acc is None else acc + contrib

    o_ref[...] = acc                                   # lane-dense (B*N, 128) unmasked store


# ----------------------------- wrapper -----------------------------
@jax.jit
def attention_forward(x, w_qkv, qkv_bias, wo_heads, bias):
    B, N, D = x.shape
    bn = B * N
    x_flat = x.reshape(bn, D)                          # free metadata reshape
    out_pad = pl.pallas_call(
        attention_kernel,
        out_shape=jax.ShapeDtypeStruct((bn, OUT_PAD), jnp.float32),
        grid_spec=pltpu.PrefetchScalarGridSpec(
            num_scalar_prefetch=0,
            grid=(1,),                                  # single step: whole batch at once
            in_specs=[
                pl.BlockSpec((bn, D), lambda i: (0, 0)),                        # x (flattened)
                pl.BlockSpec((1, 3 * INNER), lambda i: (0, 0)),                 # folded LN-beta bias
                pl.BlockSpec((D, 3 * INNER), lambda i: (0, 0)),                 # fused Wqkv (bf16)
                pl.BlockSpec((N_HEADS, DIM_HEAD, OUT_PAD), lambda i: (0, 0, 0)),# per-head Wo (bf16)
                pl.BlockSpec((N_HEADS, bn, bn), lambda i: (0, 0, 0)),           # ALiBi+mask bias
            ],
            out_specs=pl.BlockSpec((bn, OUT_PAD), lambda i: (0, 0)),
        ),
        compiler_params=pltpu.CompilerParams(
            dimension_semantics=("arbitrary",)),
    )(x_flat, qkv_bias, w_qkv, wo_heads, bias)
    return out_pad[:, :D].reshape(B, N, D)             # crop lane padding, restore (B, N, D)


# ----------------------------- pure-JAX reference -----------------------------
def reference_forward(x, gamma, beta, wq, wk, wv, wo, m_crop):
    mean = jnp.mean(x, axis=-1, keepdims=True)
    var = jnp.mean((x - mean) ** 2, axis=-1, keepdims=True)
    xn = (x - mean) / jnp.sqrt(var + LN_EPS) * gamma[0] + beta[0]
    q, k, v = xn @ wq, xn @ wk, xn @ wv

    def split_heads(t):
        B, N, _ = t.shape
        return t.reshape(B, N, N_HEADS, DIM_HEAD).transpose(0, 2, 1, 3)

    q, k, v = map(split_heads, (q, k, v))
    att = jnp.einsum('bhik,bhjk->bhij', q, k) / (DIM_HEAD ** 0.5)
    att = att + m_crop[None]
    att = jax.nn.softmax(att, axis=-1)
    out = jnp.einsum('bhij,bhjk->bhik', att, v)
    out = out.transpose(0, 2, 1, 3).reshape(x.shape[0], x.shape[1], INNER)
    return out @ wo


# ----------------------------- main -----------------------------
if __name__ == "__main__":
    key = jax.random.PRNGKey(0)
    kx, kq, kk, kv, ko = jax.random.split(key, 5)

    # Input (batch, seq, dim)
    x = jax.random.normal(kx, (BATCH, SEQ, DIM), dtype=jnp.float32)

    # Deterministic parameter init (shapes match the PyTorch module, bias=False).
    gamma = jnp.ones((1, DIM), dtype=jnp.float32)     # LayerNorm weight
    beta = jnp.zeros((1, DIM), dtype=jnp.float32)     # LayerNorm bias
    wq = jax.random.normal(kq, (DIM, INNER), dtype=jnp.float32) * 0.05
    wk = jax.random.normal(kk, (DIM, INNER), dtype=jnp.float32) * 0.05
    wv = jax.random.normal(kv, (DIM, INNER), dtype=jnp.float32) * 0.05
    wo = jax.random.normal(ko, (INNER, DIM), dtype=jnp.float32) * 0.05

    # One-time parameter prep: LN-affine + 1/sqrt(dh) folded into bf16 Wqkv, per-head
    # bf16 lane-padded Wo, block-diagonal f32 ALiBi bias.
    w_qkv, qkv_bias, wo_heads, bias = prepare_params(gamma, beta, wq, wk, wv, wo)

    # Dropout rate is 0.0 in the module defaults -> identity (nothing to do).
    # TODO(synk): non-zero dropout would need pltpu.prng_seed + stateful_bernoulli masks.
    out = attention_forward(x, w_qkv, qkv_bias, wo_heads, bias)
    out = jax.block_until_ready(out)

    m_crop = make_alibi_M(CONTEXT, N_HEADS)[:, :SEQ, :SEQ]
    ref = reference_forward(x, gamma, beta, wq, wk, wv, wo, m_crop)
    assert out.shape == (BATCH, SEQ, DIM)
    # Tolerance covers bf16 MXU operands and the approximate EUP reciprocal in the softmax
    # denominator (softmax/bias math itself stays in f32).
    assert jnp.allclose(out, ref, atol=1e-2, rtol=1e-2), "Pallas kernel mismatch vs reference"

    print("KERNEL_OK")
</pallas_src>

<mosaic_0001>
module attributes {stable_mosaic.version = 11 : i64} {
  func.func @attention_kernel(%arg0: i32, %arg1: memref<16x32xf32, #tpu.memory_space<vmem>>, %arg2: memref<1x96xf32, #tpu.memory_space<vmem>>, %arg3: memref<32x96xbf16, #tpu.memory_space<vmem>>, %arg4: memref<4x8x128xbf16, #tpu.memory_space<vmem>>, %arg5: memref<4x16x16xf32, #tpu.memory_space<vmem>>, %arg6: memref<16x128xf32, #tpu.memory_space<vmem>>) attributes {dimension_semantics = [#tpu.dimension_semantics<arbitrary>], iteration_bounds = array<i64: 1>, scalar_prefetch = 0 : i64, scratch_operands = 0 : i64, tpu.core_type = #tpu.core_type<tc>, window_params = [{pipeline_mode = #tpu.pipeline_mode<synchronous>, transform_indices = @transform_0, window_bounds = array<i64: 16, 32>}, {pipeline_mode = #tpu.pipeline_mode<synchronous>, transform_indices = @transform_1, window_bounds = array<i64: 1, 96>}, {pipeline_mode = #tpu.pipeline_mode<synchronous>, transform_indices = @transform_2, window_bounds = array<i64: 32, 96>}, {pipeline_mode = #tpu.pipeline_mode<synchronous>, transform_indices = @transform_3, window_bounds = array<i64: 4, 8, 128>}, {pipeline_mode = #tpu.pipeline_mode<synchronous>, transform_indices = @transform_4, window_bounds = array<i64: 4, 16, 16>}, {pipeline_mode = #tpu.pipeline_mode<synchronous>, transform_indices = @transform_5, window_bounds = array<i64: 16, 128>}]} {
    %c0 = arith.constant 0 : index
    %c0_0 = arith.constant 0 : index
    %0 = vector.load %arg1[%c0, %c0_0] : memref<16x32xf32, #tpu.memory_space<vmem>>, vector<16x32xf32>
    %cst = arith.constant dense<0.000000e+00> : vector<16xf32>
    %1 = vector.multi_reduction <add>, %0, %cst [1] : vector<16x32xf32> to vector<16xf32>
    %2 = vector.shape_cast %1 : vector<16xf32> to vector<16x1xf32>
    %cst_1 = arith.constant 3.200000e+01 : f32
    %3 = vector.broadcast %cst_1 : f32 to vector<16x1xf32>
    %4 = arith.divf %2, %3 : vector<16x1xf32>
    %5 = vector.broadcast %4 : vector<16x1xf32> to vector<16x32xf32>
    %6 = arith.subf %0, %5 : vector<16x32xf32>
    %7 = arith.mulf %6, %6 : vector<16x32xf32>
    %cst_2 = arith.constant dense<0.000000e+00> : vector<16xf32>
    %8 = vector.multi_reduction <add>, %7, %cst_2 [1] : vector<16x32xf32> to vector<16xf32>
    %9 = vector.shape_cast %8 : vector<16xf32> to vector<16x1xf32>
    %cst_3 = arith.constant 3.200000e+01 : f32
    %10 = vector.broadcast %cst_3 : f32 to vector<16x1xf32>
    %11 = arith.divf %9, %10 : vector<16x1xf32>
    %cst_4 = arith.constant 9.99999974E-6 : f32
    %12 = vector.broadcast %cst_4 : f32 to vector<16x1xf32>
    %13 = arith.addf %11, %12 : vector<16x1xf32>
    %14 = math.rsqrt %13 : vector<16x1xf32>
    %15 = vector.broadcast %14 : vector<16x1xf32> to vector<16x32xf32>
    %16 = arith.mulf %6, %15 : vector<16x32xf32>
    %17 = arith.truncf %16 : vector<16x32xf32> to vector<16x32xbf16>
    %c0_5 = arith.constant 0 : index
    %c0_6 = arith.constant 0 : index
    %18 = vector.load %arg3[%c0_5, %c0_6] : memref<32x96xbf16, #tpu.memory_space<vmem>>, vector<32x96xbf16>
    %cst_7 = arith.constant dense<0.000000e+00> : vector<16x96xf32>
    %19 = tpu.matmul %17, %18, %cst_7 {dimension_numbers = #tpu.dot_dimension_numbers<[1], [0], [0], [1], [0, 0, 1, 1], [], []>} : vector<16x32xbf16>, vector<32x96xbf16>, vector<16x96xf32> -> vector<16x96xf32>
    %c0_8 = arith.constant 0 : index
    %c0_9 = arith.constant 0 : index
    %20 = vector.load %arg2[%c0_8, %c0_9] : memref<1x96xf32, #tpu.memory_space<vmem>>, vector<1x96xf32>
    %21 = vector.broadcast %20 : vector<1x96xf32> to vector<16x96xf32>
    %22 = arith.addf %19, %21 : vector<16x96xf32>
    %23 = arith.truncf %22 : vector<16x96xf32> to vector<16x96xbf16>
    %24 = vector.extract_strided_slice %23 {offsets = [0, 0], sizes = [16, 8], strides = [1, 1]} : vector<16x96xbf16> to vector<16x8xbf16>
    %25 = vector.extract_strided_slice %23 {offsets = [0, 32], sizes = [16, 8], strides = [1, 1]} : vector<16x96xbf16> to vector<16x8xbf16>
    %26 = vector.extract_strided_slice %23 {offsets = [0, 64], sizes = [16, 8], strides = [1, 1]} : vector<16x96xbf16> to vector<16x8xbf16>
    %cst_10 = arith.constant dense<0.000000e+00> : vector<16x16xf32>
    %27 = tpu.matmul %24, %25, %cst_10 {dimension_numbers = #tpu.dot_dimension_numbers<[1], [1], [0], [0], [0, 0, 1, 0], [], []>} : vector<16x8xbf16>, vector<16x8xbf16>, vector<16x16xf32> -> vector<16x16xf32>
    %c0_11 = arith.constant 0 : index
    %c0_12 = arith.constant 0 : index
    %c0_13 = arith.constant 0 : index
    %28 = vector.load %arg5[%c0_11, %c0_12, %c0_13] : memref<4x16x16xf32, #tpu.memory_space<vmem>>, vector<1x16x16xf32>
    %29 = vector.shape_cast %28 : vector<1x16x16xf32> to vector<16x16xf32>
    %30 = arith.addf %27, %29 : vector<16x16xf32>
    %cst_14 = arith.constant dense<0xFF800000> : vector<16xf32>
    %31 = vector.multi_reduction <maximumf>, %30, %cst_14 [1] : vector<16x16xf32> to vector<16xf32>
    %32 = vector.shape_cast %31 : vector<16xf32> to vector<16x1xf32>
    %33 = vector.broadcast %32 : vector<16x1xf32> to vector<16x16xf32>
    %34 = arith.subf %30, %33 : vector<16x16xf32>
    %35 = math.exp %34 : vector<16x16xf32>
    %cst_15 = arith.constant dense<0.000000e+00> : vector<16xf32>
    %36 = vector.multi_reduction <add>, %35, %cst_15 [1] : vector<16x16xf32> to vector<16xf32>
    %37 = vector.shape_cast %36 : vector<16xf32> to vector<16x1xf32>
    %38 = tpu.reciprocal %37 {approx = true} : vector<16x1xf32> -> vector<16x1xf32>
    %39 = vector.broadcast %38 : vector<16x1xf32> to vector<16x16xf32>
    %40 = arith.mulf %35, %39 : vector<16x16xf32>
    %41 = arith.truncf %40 : vector<16x16xf32> to vector<16x16xbf16>
    %cst_16 = arith.constant dense<0.000000e+00> : vector<16x8xf32>
    %42 = tpu.matmul %41, %26, %cst_16 {dimension_numbers = #tpu.dot_dimension_numbers<[1], [0], [0], [1], [0, 0, 1, 1], [], []>} : vector<16x16xbf16>, vector<16x8xbf16>, vector<16x8xf32> -> vector<16x8xf32>
    %43 = arith.truncf %42 : vector<16x8xf32> to vector<16x8xbf16>
    %c0_17 = arith.constant 0 : index
    %c0_18 = arith.constant 0 : index
    %c0_19 = arith.constant 0 : index
    %44 = vector.load %arg4[%c0_17, %c0_18, %c0_19] : memref<4x8x128xbf16, #tpu.memory_space<vmem>>, vector<1x8x128xbf16>
    %45 = vector.shape_cast %44 : vector<1x8x128xbf16> to vector<8x128xbf16>
    %cst_20 = arith.constant dense<0.000000e+00> : vector<16x128xf32>
    %46 = tpu.matmul %43, %45, %cst_20 {dimension_numbers = #tpu.dot_dimension_numbers<[1], [0], [0], [1], [0, 0, 1, 1], [], []>} : vector<16x8xbf16>, vector<8x128xbf16>, vector<16x128xf32> -> vector<16x128xf32>
    %47 = vector.extract_strided_slice %23 {offsets = [0, 8], sizes = [16, 8], strides = [1, 1]} : vector<16x96xbf16> to vector<16x8xbf16>
    %48 = vector.extract_strided_slice %23 {offsets = [0, 40], sizes = [16, 8], strides = [1, 1]} : vector<16x96xbf16> to vector<16x8xbf16>
    %49 = vector.extract_strided_slice %23 {offsets = [0, 72], sizes = [16, 8], strides = [1, 1]} : vector<16x96xbf16> to vector<16x8xbf16>
    %cst_21 = arith.constant dense<0.000000e+00> : vector<16x16xf32>
    %50 = tpu.matmul %47, %48, %cst_21 {dimension_numbers = #tpu.dot_dimension_numbers<[1], [1], [0], [0], [0, 0, 1, 0], [], []>} : vector<16x8xbf16>, vector<16x8xbf16>, vector<16x16xf32> -> vector<16x16xf32>
    %c1 = arith.constant 1 : index
    %c0_22 = arith.constant 0 : index
    %c0_23 = arith.constant 0 : index
    %51 = vector.load %arg5[%c1, %c0_22, %c0_23] : memref<4x16x16xf32, #tpu.memory_space<vmem>>, vector<1x16x16xf32>
    %52 = vector.shape_cast %51 : vector<1x16x16xf32> to vector<16x16xf32>
    %53 = arith.addf %50, %52 : vector<16x16xf32>
    %cst_24 = arith.constant dense<0xFF800000> : vector<16xf32>
    %54 = vector.multi_reduction <maximumf>, %53, %cst_24 [1] : vector<16x16xf32> to vector<16xf32>
    %55 = vector.shape_cast %54 : vector<16xf32> to vector<16x1xf32>
    %56 = vector.broadcast %55 : vector<16x1xf32> to vector<16x16xf32>
    %57 = arith.subf %53, %56 : vector<16x16xf32>
    %58 = math.exp %57 : vector<16x16xf32>
    %cst_25 = arith.constant dense<0.000000e+00> : vector<16xf32>
    %59 = vector.multi_reduction <add>, %58, %cst_25 [1] : vector<16x16xf32> to vector<16xf32>
    %60 = vector.shape_cast %59 : vector<16xf32> to vector<16x1xf32>
    %61 = tpu.reciprocal %60 {approx = true} : vector<16x1xf32> -> vector<16x1xf32>
    %62 = vector.broadcast %61 : vector<16x1xf32> to vector<16x16xf32>
    %63 = arith.mulf %58, %62 : vector<16x16xf32>
    %64 = arith.truncf %63 : vector<16x16xf32> to vector<16x16xbf16>
    %cst_26 = arith.constant dense<0.000000e+00> : vector<16x8xf32>
    %65 = tpu.matmul %64, %49, %cst_26 {dimension_numbers = #tpu.dot_dimension_numbers<[1], [0], [0], [1], [0, 0, 1, 1], [], []>} : vector<16x16xbf16>, vector<16x8xbf16>, vector<16x8xf32> -> vector<16x8xf32>
    %66 = arith.truncf %65 : vector<16x8xf32> to vector<16x8xbf16>
    %c1_27 = arith.constant 1 : index
    %c0_28 = arith.constant 0 : index
    %c0_29 = arith.constant 0 : index
    %67 = vector.load %arg4[%c1_27, %c0_28, %c0_29] : memref<4x8x128xbf16, #tpu.memory_space<vmem>>, vector<1x8x128xbf16>
    %68 = vector.shape_cast %67 : vector<1x8x128xbf16> to vector<8x128xbf16>
    %cst_30 = arith.constant dense<0.000000e+00> : vector<16x128xf32>
    %69 = tpu.matmul %66, %68, %cst_30 {dimension_numbers = #tpu.dot_dimension_numbers<[1], [0], [0], [1], [0, 0, 1, 1], [], []>} : vector<16x8xbf16>, vector<8x128xbf16>, vector<16x128xf32> -> vector<16x128xf32>
    %70 = arith.addf %46, %69 : vector<16x128xf32>
    %71 = vector.extract_strided_slice %23 {offsets = [0, 16], sizes = [16, 8], strides = [1, 1]} : vector<16x96xbf16> to vector<16x8xbf16>
    %72 = vector.extract_strided_slice %23 {offsets = [0, 48], sizes = [16, 8], strides = [1, 1]} : vector<16x96xbf16> to vector<16x8xbf16>
    %73 = vector.extract_strided_slice %23 {offsets = [0, 80], sizes = [16, 8], strides = [1, 1]} : vector<16x96xbf16> to vector<16x8xbf16>
    %cst_31 = arith.constant dense<0.000000e+00> : vector<16x16xf32>
    %74 = tpu.matmul %71, %72, %cst_31 {dimension_numbers = #tpu.dot_dimension_numbers<[1], [1], [0], [0], [0, 0, 1, 0], [], []>} : vector<16x8xbf16>, vector<16x8xbf16>, vector<16x16xf32> -> vector<16x16xf32>
    %c2 = arith.constant 2 : index
    %c0_32 = arith.constant 0 : index
    %c0_33 = arith.constant 0 : index
    %75 = vector.load %arg5[%c2, %c0_32, %c0_33] : memref<4x16x16xf32, #tpu.memory_space<vmem>>, vector<1x16x16xf32>
    %76 = vector.shape_cast %75 : vector<1x16x16xf32> to vector<16x16xf32>
    %77 = arith.addf %74, %76 : vector<16x16xf32>
    %cst_34 = arith.constant dense<0xFF800000> : vector<16xf32>
    %78 = vector.multi_reduction <maximumf>, %77, %cst_34 [1] : vector<16x16xf32> to vector<16xf32>
    %79 = vector.shape_cast %78 : vector<16xf32> to vector<16x1xf32>
    %80 = vector.broadcast %79 : vector<16x1xf32> to vector<16x16xf32>
    %81 = arith.subf %77, %80 : vector<16x16xf32>
    %82 = math.exp %81 : vector<16x16xf32>
    %cst_35 = arith.constant dense<0.000000e+00> : vector<16xf32>
    %83 = vector.multi_reduction <add>, %82, %cst_35 [1] : vector<16x16xf32> to vector<16xf32>
    %84 = vector.shape_cast %83 : vector<16xf32> to vector<16x1xf32>
    %85 = tpu.reciprocal %84 {approx = true} : vector<16x1xf32> -> vector<16x1xf32>
    %86 = vector.broadcast %85 : vector<16x1xf32> to vector<16x16xf32>
    %87 = arith.mulf %82, %86 : vector<16x16xf32>
    %88 = arith.truncf %87 : vector<16x16xf32> to vector<16x16xbf16>
    %cst_36 = arith.constant dense<0.000000e+00> : vector<16x8xf32>
    %89 = tpu.matmul %88, %73, %cst_36 {dimension_numbers = #tpu.dot_dimension_numbers<[1], [0], [0], [1], [0, 0, 1, 1], [], []>} : vector<16x16xbf16>, vector<16x8xbf16>, vector<16x8xf32> -> vector<16x8xf32>
    %90 = arith.truncf %89 : vector<16x8xf32> to vector<16x8xbf16>
    %c2_37 = arith.constant 2 : index
    %c0_38 = arith.constant 0 : index
    %c0_39 = arith.constant 0 : index
    %91 = vector.load %arg4[%c2_37, %c0_38, %c0_39] : memref<4x8x128xbf16, #tpu.memory_space<vmem>>, vector<1x8x128xbf16>
    %92 = vector.shape_cast %91 : vector<1x8x128xbf16> to vector<8x128xbf16>
    %cst_40 = arith.constant dense<0.000000e+00> : vector<16x128xf32>
    %93 = tpu.matmul %90, %92, %cst_40 {dimension_numbers = #tpu.dot_dimension_numbers<[1], [0], [0], [1], [0, 0, 1, 1], [], []>} : vector<16x8xbf16>, vector<8x128xbf16>, vector<16x128xf32> -> vector<16x128xf32>
    %94 = arith.addf %70, %93 : vector<16x128xf32>
    %95 = vector.extract_strided_slice %23 {offsets = [0, 24], sizes = [16, 8], strides = [1, 1]} : vector<16x96xbf16> to vector<16x8xbf16>
    %96 = vector.extract_strided_slice %23 {offsets = [0, 56], sizes = [16, 8], strides = [1, 1]} : vector<16x96xbf16> to vector<16x8xbf16>
    %97 = vector.extract_strided_slice %23 {offsets = [0, 88], sizes = [16, 8], strides = [1, 1]} : vector<16x96xbf16> to vector<16x8xbf16>
    %cst_41 = arith.constant dense<0.000000e+00> : vector<16x16xf32>
    %98 = tpu.matmul %95, %96, %cst_41 {dimension_numbers = #tpu.dot_dimension_numbers<[1], [1], [0], [0], [0, 0, 1, 0], [], []>} : vector<16x8xbf16>, vector<16x8xbf16>, vector<16x16xf32> -> vector<16x16xf32>
    %c3 = arith.constant 3 : index
    %c0_42 = arith.constant 0 : index
    %c0_43 = arith.constant 0 : index
    %99 = vector.load %arg5[%c3, %c0_42, %c0_43] : memref<4x16x16xf32, #tpu.memory_space<vmem>>, vector<1x16x16xf32>
    %100 = vector.shape_cast %99 : vector<1x16x16xf32> to vector<16x16xf32>
    %101 = arith.addf %98, %100 : vector<16x16xf32>
    %cst_44 = arith.constant dense<0xFF800000> : vector<16xf32>
    %102 = vector.multi_reduction <maximumf>, %101, %cst_44 [1] : vector<16x16xf32> to vector<16xf32>
    %103 = vector.shape_cast %102 : vector<16xf32> to vector<16x1xf32>
    %104 = vector.broadcast %103 : vector<16x1xf32> to vector<16x16xf32>
    %105 = arith.subf %101, %104 : vector<16x16xf32>
    %106 = math.exp %105 : vector<16x16xf32>
    %cst_45 = arith.constant dense<0.000000e+00> : vector<16xf32>
    %107 = vector.multi_reduction <add>, %106, %cst_45 [1] : vector<16x16xf32> to vector<16xf32>
    %108 = vector.shape_cast %107 : vector<16xf32> to vector<16x1xf32>
    %109 = tpu.reciprocal %108 {approx = true} : vector<16x1xf32> -> vector<16x1xf32>
    %110 = vector.broadcast %109 : vector<16x1xf32> to vector<16x16xf32>
    %111 = arith.mulf %106, %110 : vector<16x16xf32>
    %112 = arith.truncf %111 : vector<16x16xf32> to vector<16x16xbf16>
    %cst_46 = arith.constant dense<0.000000e+00> : vector<16x8xf32>
    %113 = tpu.matmul %112, %97, %cst_46 {dimension_numbers = #tpu.dot_dimension_numbers<[1], [0], [0], [1], [0, 0, 1, 1], [], []>} : vector<16x16xbf16>, vector<16x8xbf16>, vector<16x8xf32> -> vector<16x8xf32>
    %114 = arith.truncf %113 : vector<16x8xf32> to vector<16x8xbf16>
    %c3_47 = arith.constant 3 : index
    %c0_48 = arith.constant 0 : index
    %c0_49 = arith.constant 0 : index
    %115 = vector.load %arg4[%c3_47, %c0_48, %c0_49] : memref<4x8x128xbf16, #tpu.memory_space<vmem>>, vector<1x8x128xbf16>
    %116 = vector.shape_cast %115 : vector<1x8x128xbf16> to vector<8x128xbf16>
    %cst_50 = arith.constant dense<0.000000e+00> : vector<16x128xf32>
    %117 = tpu.matmul %114, %116, %cst_50 {dimension_numbers = #tpu.dot_dimension_numbers<[1], [0], [0], [1], [0, 0, 1, 1], [], []>} : vector<16x8xbf16>, vector<8x128xbf16>, vector<16x128xf32> -> vector<16x128xf32>
    %118 = arith.addf %94, %117 : vector<16x128xf32>
    %c0_51 = arith.constant 0 : index
    %c0_52 = arith.constant 0 : index
    %119 = vector.load %arg6[%c0_51, %c0_52] : memref<16x128xf32, #tpu.memory_space<vmem>>, vector<16x128xf32>
    tpu.vector_store %arg6[%c0_51, %c0_52], %118 {strides = array<i32>} : memref<16x128xf32, #tpu.memory_space<vmem>>, vector<16x128xf32>,
    return
  }
  func.func @transform_0(%arg0: i32) -> (i32, i32) {
    %c0_i32 = arith.constant 0 : i32
    %c0_i32_0 = arith.constant 0 : i32
    %c0_i32_1 = arith.constant 0 : i32
    return %c0_i32, %c0_i32_0 : i32, i32
  }
  func.func @transform_1(%arg0: i32) -> (i32, i32) {
    %c0_i32 = arith.constant 0 : i32
    %c0_i32_0 = arith.constant 0 : i32
    %c0_i32_1 = arith.constant 0 : i32
    return %c0_i32, %c0_i32_0 : i32, i32
  }
  func.func @transform_2(%arg0: i32) -> (i32, i32) {
    %c0_i32 = arith.constant 0 : i32
    %c0_i32_0 = arith.constant 0 : i32
    %c0_i32_1 = arith.constant 0 : i32
    return %c0_i32, %c0_i32_0 : i32, i32
  }
  func.func @transform_3(%arg0: i32) -> (i32, i32, i32) {
    %c0_i32 = arith.constant 0 : i32
    %c0_i32_0 = arith.constant 0 : i32
    %c0_i32_1 = arith.constant 0 : i32
    %c0_i32_2 = arith.constant 0 : i32
    return %c0_i32, %c0_i32_0, %c0_i32_1 : i32, i32, i32
  }
  func.func @transform_4(%arg0: i32) -> (i32, i32, i32) {
    %c0_i32 = arith.constant 0 : i32
    %c0_i32_0 = arith.constant 0 : i32
    %c0_i32_1 = arith.constant 0 : i32
    %c0_i32_2 = arith.constant 0 : i32
    return %c0_i32, %c0_i32_0, %c0_i32_1 : i32, i32, i32
  }
  func.func @transform_5(%arg0: i32) -> (i32, i32) {
    %c0_i32 = arith.constant 0 : i32
    %c0_i32_0 = arith.constant 0 : i32
    %c0_i32_1 = arith.constant 0 : i32
    return %c0_i32, %c0_i32_0 : i32, i32
  }
}

</mosaic_0001>

<llo_original>
// kernel: attention_forward.1
$region0: #{attention_forward.1}
  #allocation0 [shape = 'u32[]', space=smem, size = 0x4, offset = 0x4, fixed_abs, tag = 'smem constant byte address 0x4 - core index']
  #allocation1 [shape = 'u32[144,128]{1,0:T(1,128)}', space=vmem, size = 0x12000, scoped, tag = 'internal scratch']
  %s0 = inlined_call_operand.hbm [shape: f32[16,32], index: 0, kind: input, shape index: {}]
  %s1 = inlined_call_operand.vmem [shape: f32[1,96], index: 1, kind: input, shape index: {}]
  %s2 = inlined_call_operand.hbm [shape: bf16[32,96], index: 2, kind: input, shape index: {}]
  %s3 = inlined_call_operand.hbm [shape: bf16[4,8,128], index: 3, kind: input, shape index: {}]
  %s4 = inlined_call_operand.hbm [shape: f32[4,16,16], index: 4, kind: input, shape index: {}]
  %s5 = inlined_call_operand.vmem [shape: f32[16,128], index: 5, kind: output, shape index: {}]
  %s6 = sld [smem:[#allocation0]]
  $region46: #{attention_forward.1} parent=0
    _
  %s8 = ssub.s32 1, %s6
  %s9 = scalar_select 0, %s8, %s6
  $region1: #{attention_forward.1} parent=0
    #allocation2 [shape = 'u8[8192]{0}', space=vmem, size = 0x2000, scoped, tag = 'input window, operand 0, single buffered']
    #allocation3 [shape = 's32[1]{0}', space=sflag, size = 0x4, scoped, tag = 'scoped memory for attention_forward.1']
    #allocation4 [shape = 'u8[8192]{0}', space=vmem, size = 0x2000, scoped, tag = 'input window, operand 2, single buffered']
    #allocation5 [shape = 's32[1]{0}', space=sflag, size = 0x4, scoped, tag = 'scoped memory for attention_forward.1']
    #allocation6 [shape = 'u8[8192]{0}', space=vmem, size = 0x2000, scoped, tag = 'input window, operand 3, single buffered']
    #allocation7 [shape = 'u8[32768]{0}', space=vmem, size = 0x8000, scoped, tag = 'input window, operand 4, single buffered']
    #allocation8 [shape = 's32[1]{0}', space=sflag, size = 0x4, scoped, tag = 'scoped memory for attention_forward.1']
    %10 = vsyncpa [#allocation3], 0
    %11 = vsyncpa [#allocation5], 0
    %12 = vsyncpa [#allocation8], 0
    // Predicated region
    $region2: #{attention_forward.1} parent=1 // pred_check
      _
    $region3: #{attention_forward.1} parent=1 // pred_check_branch
      %14 = sbr.rel (0) target = $region5
    $region4: #{attention_forward.1} parent=1 // pred_region
      %s16 = ssub.s32 256, 256
      %17 = vsyncadd [#allocation3], %s16
      %s18 = sshll.u32 [#allocation2], 4
      %s19 = int_to_ptr.vmem [resolvable:$true] %s18
      %24 = dma.hbm_to_vmem [thread:$0]  %s0, 256, %s19, [#allocation3], 128, 128, 8
    $region5: #{attention_forward.1} parent=1 // pred_fallthru
      _
    // Predicated region
    $region6: #{attention_forward.1} parent=1 // pred_check
      _
    $region7: #{attention_forward.1} parent=1 // pred_check_branch
      %26 = sbr.rel (0) target = $region9
    $region8: #{attention_forward.1} parent=1 // pred_region
      _
    $region9: #{attention_forward.1} parent=1 // pred_fallthru
      _
    // Predicated region
    $region10: #{attention_forward.1} parent=1 // pred_check
      _
    $region11: #{attention_forward.1} parent=1 // pred_check_branch
      %28 = sbr.rel (0) target = $region13
    $region12: #{attention_forward.1} parent=1 // pred_region
      %s30 = ssub.s32 256, 256
      %31 = vsyncadd [#allocation5], %s30
      %s32 = sshll.u32 [#allocation4], 4
      %s33 = int_to_ptr.vmem [resolvable:$true] %s32
      %38 = dma.hbm_to_vmem [thread:$0]  %s2, 256, %s33, [#allocation5], 64, 64, 4
    $region13: #{attention_forward.1} parent=1 // pred_fallthru
      _
    // Predicated region
    $region14: #{attention_forward.1} parent=1 // pred_check
      _
    $region15: #{attention_forward.1} parent=1 // pred_check_branch
      %40 = sbr.rel (0) target = $region17
    $region16: #{attention_forward.1} parent=1 // pred_region
      %s42 = ssub.s32 256, 256
      %43 = vsyncadd [#allocation5], %s42
      %s44 = sshll.u32 [#allocation6], 4
      %s45 = int_to_ptr.vmem [resolvable:$true] %s44
      %50 = dma.hbm_to_vmem [thread:$0]  %s3, 256, %s45, [#allocation5], 64, 64, 4
    $region17: #{attention_forward.1} parent=1 // pred_fallthru
      _
    // Predicated region
    $region18: #{attention_forward.1} parent=1 // pred_check
      _
    $region19: #{attention_forward.1} parent=1 // pred_check_branch
      %52 = sbr.rel (0) target = $region21
    $region20: #{attention_forward.1} parent=1 // pred_region
      %s54 = ssub.s32 1024, 1024
      %55 = vsyncadd [#allocation8], %s54
      %s56 = sshll.u32 [#allocation7], 4
      %s57 = int_to_ptr.vmem [resolvable:$true] %s56
      %62 = dma.hbm_to_vmem [thread:$0]  %s4, 1024, %s57, [#allocation8], 128, 128, 8
    $region21: #{attention_forward.1} parent=1 // pred_fallthru
      _
    // Predicated region
    $region22: #{attention_forward.1} parent=1 // pred_check
      _
    $region23: #{attention_forward.1} parent=1 // pred_check_branch
      %64 = sbr.rel (0) target = $region25
    $region24: #{attention_forward.1} parent=1 // pred_region
      %65 = dma.done [#allocation3], 256
    $region25: #{attention_forward.1} parent=1 // pred_fallthru
      _
    // Predicated region
    $region26: #{attention_forward.1} parent=1 // pred_check
      _
    $region27: #{attention_forward.1} parent=1 // pred_check_branch
      %67 = sbr.rel (0) target = $region29
    $region28: #{attention_forward.1} parent=1 // pred_region
      %68 = dma.done [#allocation5], 256
    $region29: #{attention_forward.1} parent=1 // pred_fallthru
      _
    // Predicated region
    $region30: #{attention_forward.1} parent=1 // pred_check
      _
    $region31: #{attention_forward.1} parent=1 // pred_check_branch
      %70 = sbr.rel (0) target = $region33
    $region32: #{attention_forward.1} parent=1 // pred_region
      %71 = dma.done [#allocation5], 256
    $region33: #{attention_forward.1} parent=1 // pred_fallthru
      _
    // Predicated region
    $region34: #{attention_forward.1} parent=1 // pred_check
      _
    $region35: #{attention_forward.1} parent=1 // pred_check_branch
      %73 = sbr.rel (0) target = $region37
    $region36: #{attention_forward.1} parent=1 // pred_region
      %74 = dma.done [#allocation8], 1024
    $region37: #{attention_forward.1} parent=1 // pred_fallthru
      _
    %v76 = vld [vmem:[#allocation2] sm:$0xff]
    %v77 = vld [vmem:[#allocation2 + $0x8] sm:$0xff]
    %vm78 = vcmask 261120
    %v79 = vsel %vm78, %v76, 0.0
    %80 = vadd.xlane.f32.xlu0 %v79
    %v81 = vpop.xlane.xlu0 %80
    %v82 = vsel %vm78, %v77, 0.0
    %83 = vadd.xlane.f32.xlu0 %v82
    %v84 = vpop.xlane.xlu0 %83
    %v85 = vrcp.pop 32.0
    %v86 = vmul.f32 %v81, %v85
    %v87 = vmul.f32 %v84, %v85
    %v88 = vsub.f32 %v76, %v86
    %v89 = vsub.f32 %v77, %v87
    %v90 = vmul.f32 %v88, %v88
    %v91 = vmul.f32 %v89, %v89
    %v92 = vsel %vm78, %v90, 0.0
    %93 = vadd.xlane.f32.xlu0 %v92
    %v94 = vpop.xlane.xlu0 %93
    %v95 = vsel %vm78, %v91, 0.0
    %96 = vadd.xlane.f32.xlu0 %v95
    %v97 = vpop.xlane.xlu0 %96
    %v98 = vmul.f32 %v94, %v85
    %v99 = vmul.f32 %v97, %v85
    %v100 = vadd.f32 %v98, 1e-05
    %v101 = vadd.f32 %v99, 1e-05
    %v102 = vrsqrt.pop %v100
    %v103 = vrsqrt.pop %v101
    %v104 = vmul.f32 %v88, %v102
    %v105 = vmul.f32 %v89, %v103
    %v106 = vpack.c.bf16 %v105, %v104
    %v107 = vld [vmem:[#allocation4] sm:$0xf]
    %v108 = vld [vmem:[#allocation4 + $0x4] sm:$0xf]
    %v109 = vld [vmem:[#allocation4 + $0x8] sm:$0xf]
    %v110 = vld [vmem:[#allocation4 + $0xc] sm:$0xf]
    %v111 = vld [vmem:[%s1] sm:$0x1]
    %v113 = vlaneseq
    %v114 = vshrl.u32 %v113, 7
    %v115 = vsub.s32 0, %v114
    %v116 = vrot.slane %v111, %v115
    %v122 = vunpack.c.l.b16 %v107
    %v123 = vunpack.c.l.b16 %v108
    %v124 = vunpack.c.l.b16 %v109
    %v125 = vunpack.c.l.b16 %v110
    %v126 = vpack.c.b16 %v123, %v122
    %v127 = vpack.c.b16 %v125, %v124
    %v131 = vsel %vm78, %v106, 0
    %133 = vmatprep.subr.bf16.mxu0 0
    %134 = vmatpush1.bf16.msra.mxu0 %v126
    %135 = vmatprep.subr.bf16.mxu0 0
    %136 = vmatpush1.bf16.msra.mxu0 %v127
    %137 = vmatprep.subr.bf16.mxu0 0
    %138 = vmatpush1.bf16.msra.mxu0 0
    %139 = vmatprep.subr.bf16.mxu0 0
    %140 = vmatpush1.bf16.msra.mxu0 0
    %141 = vmatprep.subr.bf16.mxu0 0
    %142 = vmatpush1.bf16.msra.mxu0 0
    %143 = vmatprep.subr.bf16.mxu0 0
    %144 = vmatpush1.bf16.msra.mxu0 0
    %145 = vmatprep.subr.bf16.mxu0 0
    %146 = vmatpush1.bf16.msra.mxu0 0
    %147 = vmatprep.subr.bf16.mxu0 0
    %148 = vmatpush1.bf16.msra.mxu0 0
    %149 = vmatprep.subr.bf16.mxu0 0
    %150 = vmatpush1.bf16.msra.mxu0 0
    %151 = vmatprep.subr.bf16.mxu0 0
    %152 = vmatpush1.bf16.msra.mxu0 0
    %153 = vmatprep.subr.bf16.mxu0 0
    %154 = vmatpush1.bf16.msra.mxu0 0
    %155 = vmatprep.subr.bf16.mxu0 0
    %156 = vmatpush1.bf16.msra.mxu0 0
    %157 = vmatprep.subr.bf16.mxu0 0
    %158 = vmatpush1.bf16.msra.mxu0 0
    %159 = vmatprep.subr.bf16.mxu0 0
    %160 = vmatpush1.bf16.msra.mxu0 0
    %161 = vmatprep.subr.bf16.mxu0 0
    %162 = vmatpush1.bf16.msra.mxu0 0
    %163 = vmatprep.subr.bf16.mxu0 0
    %164 = vmatpush1.bf16.msra.mxu0 0
    %165 = vmatprep.mubr.bf16.mxu0 0
    %166 = vmatmul.mubr.bf16.gmra.mrb[0].mxu0 %v131
    %v167 = vpop.f32.mrb[0].mxu0
    %v168 = vadd.f32 %v116, %v167
    %v169 = vpop.f32.mrb[0].mxu0
    %v170 = vpop.f32.mrb[0].mxu0
    %v171 = vadd.f32 %v116, %v170
    %v172 = vpop.f32.mrb[0].mxu0
    %173 = vdwg.mxu0
    %v174 = vpack.c.bf16 %v171, %v168
    %v175 = vld [vmem:[#allocation7] sm:$0xff]
    %v176 = vld [vmem:[#allocation7 + $0x8] sm:$0xff]
    %178 = vrot.lane.b32.xlu0 %v174, 96
    %v179 = vpop.permute.xlu0 %178
    %vm180 = vcmask 64512
    %v182 = vsel %vm180, %v174, 0
    %v185 = vsel %vm180, %v179, 0
    %187 = vmatprep.subr.bf16.mxu0 0
    %188 = vmatpush1.bf16.xpose.msra.mxu0 %v185
    %189 = vmatprep.subr.bf16.mxu0 0
    %190 = vmatpush1.bf16.xpose.msra.mxu0 0
    %191 = vmatprep.subr.bf16.mxu0 0
    %192 = vmatpush1.bf16.xpose.msra.mxu0 0
    %193 = vmatprep.subr.bf16.mxu0 0
    %194 = vmatpush1.bf16.xpose.msra.mxu0 0
    %195 = vmatprep.subr.bf16.mxu0 0
    %196 = vmatpush1.bf16.xpose.msra.mxu0 0
    %197 = vmatprep.subr.bf16.mxu0 0
    %198 = vmatpush1.bf16.xpose.msra.mxu0 0
    %199 = vmatprep.subr.bf16.mxu0 0
    %200 = vmatpush1.bf16.xpose.msra.mxu0 0
    %201 = vmatprep.subr.bf16.mxu0 0
    %202 = vmatpush1.bf16.xpose.msra.mxu0 0
    %203 = vmatprep.subr.bf16.mxu0 0
    %204 = vmatpush1.bf16.xpose.msra.mxu0 0
    %205 = vmatprep.subr.bf16.mxu0 0
    %206 = vmatpush1.bf16.xpose.msra.mxu0 0
    %207 = vmatprep.subr.bf16.mxu0 0
    %208 = vmatpush1.bf16.xpose.msra.mxu0 0
    %209 = vmatprep.subr.bf16.mxu0 0
    %210 = vmatpush1.bf16.xpose.msra.mxu0 0
    %211 = vmatprep.subr.bf16.mxu0 0
    %212 = vmatpush1.bf16.xpose.msra.mxu0 0
    %213 = vmatprep.subr.bf16.mxu0 0
    %214 = vmatpush1.bf16.xpose.msra.mxu0 0
    %215 = vmatprep.subr.bf16.mxu0 0
    %216 = vmatpush1.bf16.xpose.msra.mxu0 0
    %217 = vmatprep.subr.bf16.mxu0 0
    %218 = vmatpush1.bf16.xpose.msra.mxu0 0
    %219 = vmatprep.mubr.bf16.mxu0 0
    %220 = vmatmul.mubr.bf16.gmra.mrb[0].mxu0 %v182
    %v221 = vpop.f32.mrb[0].mxu0
    %v222 = vadd.f32 %v175, %v221
    %v223 = vpop.f32.mrb[0].mxu0
    %v224 = vpop.f32.mrb[0].mxu0
    %v225 = vadd.f32 %v176, %v224
    %v226 = vpop.f32.mrb[0].mxu0
    %227 = vdwg.mxu0
    %vm228 = vcmask 130048
    %v229 = vsel %vm228, %v222, -inf
    %230 = vmax.xlane.f32.xlu0 %v229
    %v231 = vpop.xlane.xlu0 %230
    %v232 = vsel %vm228, %v225, -inf
    %233 = vmax.xlane.f32.xlu0 %v232
    %v234 = vpop.xlane.xlu0 %233
    %v235 = vsub.f32 %v222, %v231
    %v236 = vsub.f32 %v225, %v234
    %v237 = vmul.f32 %v235, 1.442695
    %v238 = vpow.pop %v237
    %v239 = vmul.f32 %v236, 1.442695
    %v240 = vpow.pop %v239
    %v241 = vsel %vm228, %v238, 0.0
    %242 = vadd.xlane.f32.xlu0 %v241
    %v243 = vpop.xlane.xlu0 %242
    %v244 = vsel %vm228, %v240, 0.0
    %245 = vadd.xlane.f32.xlu0 %v244
    %v246 = vpop.xlane.xlu0 %245
    %v247 = vrcp.pop %v243
    %v248 = vrcp.pop %v246
    %v249 = vmul.f32 %v238, %v247
    %v250 = vmul.f32 %v240, %v248
    %v251 = vpack.c.bf16 %v250, %v249
    %252 = vrot.lane.b32.xlu0 %v174, 64
    %v253 = vpop.permute.xlu0 %252
    %v256 = vsel %vm228, %v251, 0
    %258 = vmatprep.subr.bf16.mxu0 0
    %259 = vmatpush1.bf16.msra.mxu0 %v253
    %260 = vmatprep.subr.bf16.mxu0 0
    %261 = vmatpush1.bf16.msra.mxu0 0
    %262 = vmatprep.subr.bf16.mxu0 0
    %263 = vmatpush1.bf16.msra.mxu0 0
    %264 = vmatprep.subr.bf16.mxu0 0
    %265 = vmatpush1.bf16.msra.mxu0 0
    %266 = vmatprep.subr.bf16.mxu0 0
    %267 = vmatpush1.bf16.msra.mxu0 0
    %268 = vmatprep.subr.bf16.mxu0 0
    %269 = vmatpush1.bf16.msra.mxu0 0
    %270 = vmatprep.subr.bf16.mxu0 0
    %271 = vmatpush1.bf16.msra.mxu0 0
    %272 = vmatprep.subr.bf16.mxu0 0
    %273 = vmatpush1.bf16.msra.mxu0 0
    %274 = vmatprep.subr.bf16.mxu0 0
    %275 = vmatpush1.bf16.msra.mxu0 0
    %276 = vmatprep.subr.bf16.mxu0 0
    %277 = vmatpush1.bf16.msra.mxu0 0
    %278 = vmatprep.subr.bf16.mxu0 0
    %279 = vmatpush1.bf16.msra.mxu0 0
    %280 = vmatprep.subr.bf16.mxu0 0
    %281 = vmatpush1.bf16.msra.mxu0 0
    %282 = vmatprep.subr.bf16.mxu0 0
    %283 = vmatpush1.bf16.msra.mxu0 0
    %284 = vmatprep.subr.bf16.mxu0 0
    %285 = vmatpush1.bf16.msra.mxu0 0
    %286 = vmatprep.subr.bf16.mxu0 0
    %287 = vmatpush1.bf16.msra.mxu0 0
    %288 = vmatprep.subr.bf16.mxu0 0
    %289 = vmatpush1.bf16.msra.mxu0 0
    %290 = vmatprep.mubr.bf16.mxu0 0
    %291 = vmatmul.mubr.bf16.gmra.mrb[0].mxu0 %v256
    %v292 = vpop.f32.mrb[0].mxu0
    %v293 = vadd.f32 0.0, %v292
    %v294 = vpop.f32.mrb[0].mxu0
    %v295 = vpop.f32.mrb[0].mxu0
    %v296 = vadd.f32 0.0, %v295
    %v297 = vpop.f32.mrb[0].mxu0
    %298 = vdwg.mxu0
    %v299 = vpack.c.bf16 %v296, %v293
    %v300 = vld [vmem:[#allocation6] sm:$0xf]
    %s301 = scalar_lea.vmem [#allocation7], 16
    %v302 = vld [vmem:[%s301] sm:$0xff]
    %v303 = vld [vmem:[%s301 + $0x8] sm:$0xff]
    %304 = vrot.lane.b32.xlu0 %v174, 120
    %v305 = vpop.permute.xlu0 %304
    %306 = vrot.lane.b32.xlu0 %v174, 88
    %v307 = vpop.permute.xlu0 %306
    %v309 = vsel %vm180, %v305, 0
    %v312 = vsel %vm180, %v307, 0
    %314 = vmatprep.subr.bf16.mxu0 0
    %315 = vmatpush1.bf16.xpose.msra.mxu0 %v312
    %316 = vmatprep.subr.bf16.mxu0 0
    %317 = vmatpush1.bf16.xpose.msra.mxu0 0
    %318 = vmatprep.subr.bf16.mxu0 0
    %319 = vmatpush1.bf16.xpose.msra.mxu0 0
    %320 = vmatprep.subr.bf16.mxu0 0
    %321 = vmatpush1.bf16.xpose.msra.mxu0 0
    %322 = vmatprep.subr.bf16.mxu0 0
    %323 = vmatpush1.bf16.xpose.msra.mxu0 0
    %324 = vmatprep.subr.bf16.mxu0 0
    %325 = vmatpush1.bf16.xpose.msra.mxu0 0
    %326 = vmatprep.subr.bf16.mxu0 0
    %327 = vmatpush1.bf16.xpose.msra.mxu0 0
    %328 = vmatprep.subr.bf16.mxu0 0
    %329 = vmatpush1.bf16.xpose.msra.mxu0 0
    %330 = vmatprep.subr.bf16.mxu0 0
    %331 = vmatpush1.bf16.xpose.msra.mxu0 0
    %332 = vmatprep.subr.bf16.mxu0 0
    %333 = vmatpush1.bf16.xpose.msra.mxu0 0
    %334 = vmatprep.subr.bf16.mxu0 0
    %335 = vmatpush1.bf16.xpose.msra.mxu0 0
    %336 = vmatprep.subr.bf16.mxu0 0
    %337 = vmatpush1.bf16.xpose.msra.mxu0 0
    %338 = vmatprep.subr.bf16.mxu0 0
    %339 = vmatpush1.bf16.xpose.msra.mxu0 0
    %340 = vmatprep.subr.bf16.mxu0 0
    %341 = vmatpush1.bf16.xpose.msra.mxu0 0
    %342 = vmatprep.subr.bf16.mxu0 0
    %343 = vmatpush1.bf16.xpose.msra.mxu0 0
    %344 = vmatprep.subr.bf16.mxu0 0
    %345 = vmatpush1.bf16.xpose.msra.mxu0 0
    %346 = vmatprep.mubr.bf16.mxu0 0
    %347 = vmatmul.mubr.bf16.gmra.mrb[0].mxu0 %v309
    %v348 = vpop.f32.mrb[0].mxu0
    %v349 = vadd.f32 %v302, %v348
    %v350 = vpop.f32.mrb[0].mxu0
    %v351 = vpop.f32.mrb[0].mxu0
    %v352 = vadd.f32 %v303, %v351
    %v353 = vpop.f32.mrb[0].mxu0
    %354 = vdwg.mxu0
    %v355 = vsel %vm228, %v349, -inf
    %356 = vmax.xlane.f32.xlu0 %v355
    %v357 = vpop.xlane.xlu0 %356
    %v358 = vsel %vm228, %v352, -inf
    %359 = vmax.xlane.f32.xlu0 %v358
    %v360 = vpop.xlane.xlu0 %359
    %v361 = vsub.f32 %v349, %v357
    %v362 = vsub.f32 %v352, %v360
    %v363 = vmul.f32 %v361, 1.442695
    %v364 = vpow.pop %v363
    %v365 = vmul.f32 %v362, 1.442695
    %v366 = vpow.pop %v365
    %v367 = vsel %vm228, %v364, 0.0
    %368 = vadd.xlane.f32.xlu0 %v367
    %v369 = vpop.xlane.xlu0 %368
    %v370 = vsel %vm228, %v366, 0.0
    %371 = vadd.xlane.f32.xlu0 %v370
    %v372 = vpop.xlane.xlu0 %371
    %v373 = vrcp.pop %v369
    %v374 = vrcp.pop %v372
    %v375 = vmul.f32 %v364, %v373
    %v376 = vmul.f32 %v366, %v374
    %v377 = vpack.c.bf16 %v376, %v375
    %378 = vrot.lane.b32.xlu0 %v174, 56
    %v379 = vpop.permute.xlu0 %378
    %v382 = vsel %vm228, %v377, 0
    %384 = vmatprep.subr.bf16.mxu0 0
    %385 = vmatpush1.bf16.msra.mxu0 %v379
    %386 = vmatprep.subr.bf16.mxu0 0
    %387 = vmatpush1.bf16.msra.mxu0 0
    %388 = vmatprep.subr.bf16.mxu0 0
    %389 = vmatpush1.bf16.msra.mxu0 0
    %390 = vmatprep.subr.bf16.mxu0 0
    %391 = vmatpush1.bf16.msra.mxu0 0
    %392 = vmatprep.subr.bf16.mxu0 0
    %393 = vmatpush1.bf16.msra.mxu0 0
    %394 = vmatprep.subr.bf16.mxu0 0
    %395 = vmatpush1.bf16.msra.mxu0 0
    %396 = vmatprep.subr.bf16.mxu0 0
    %397 = vmatpush1.bf16.msra.mxu0 0
    %398 = vmatprep.subr.bf16.mxu0 0
    %399 = vmatpush1.bf16.msra.mxu0 0
    %400 = vmatprep.subr.bf16.mxu0 0
    %401 = vmatpush1.bf16.msra.mxu0 0
    %402 = vmatprep.subr.bf16.mxu0 0
    %403 = vmatpush1.bf16.msra.mxu0 0
    %404 = vmatprep.subr.bf16.mxu0 0
    %405 = vmatpush1.bf16.msra.mxu0 0
    %406 = vmatprep.subr.bf16.mxu0 0
    %407 = vmatpush1.bf16.msra.mxu0 0
    %408 = vmatprep.subr.bf16.mxu0 0
    %409 = vmatpush1.bf16.msra.mxu0 0
    %410 = vmatprep.subr.bf16.mxu0 0
    %411 = vmatpush1.bf16.msra.mxu0 0
    %412 = vmatprep.subr.bf16.mxu0 0
    %413 = vmatpush1.bf16.msra.mxu0 0
    %414 = vmatprep.subr.bf16.mxu0 0
    %415 = vmatpush1.bf16.msra.mxu0 0
    %416 = vmatprep.mubr.bf16.mxu0 0
    %417 = vmatmul.mubr.bf16.gmra.mrb[0].mxu0 %v382
    %v418 = vpop.f32.mrb[0].mxu0
    %v419 = vadd.f32 0.0, %v418
    %v420 = vpop.f32.mrb[0].mxu0
    %v421 = vpop.f32.mrb[0].mxu0
    %v422 = vadd.f32 0.0, %v421
    %v423 = vpop.f32.mrb[0].mxu0
    %424 = vdwg.mxu0
    %v425 = vpack.c.bf16 %v422, %v419
    %s426 = scalar_lea.vmem [#allocation6], 4
    %v427 = vld [vmem:[%s426] sm:$0xf]
    %v429 = vsel %vm180, %v425, 0
    %vm431 = vcmask 1043456
    %v433 = vsel %vm431, %v427, 0
    %435 = vmatprep.subr.bf16.mxu0 0
    %436 = vmatpush1.bf16.msra.mxu0 %v433
    %437 = vmatprep.subr.bf16.mxu0 0
    %438 = vmatpush1.bf16.msra.mxu0 0
    %439 = vmatprep.subr.bf16.mxu0 0
    %440 = vmatpush1.bf16.msra.mxu0 0
    %441 = vmatprep.subr.bf16.mxu0 0
    %442 = vmatpush1.bf16.msra.mxu0 0
    %443 = vmatprep.subr.bf16.mxu0 0
    %444 = vmatpush1.bf16.msra.mxu0 0
    %445 = vmatprep.subr.bf16.mxu0 0
    %446 = vmatpush1.bf16.msra.mxu0 0
    %447 = vmatprep.subr.bf16.mxu0 0
    %448 = vmatpush1.bf16.msra.mxu0 0
    %449 = vmatprep.subr.bf16.mxu0 0
    %450 = vmatpush1.bf16.msra.mxu0 0
    %451 = vmatprep.subr.bf16.mxu0 0
    %452 = vmatpush1.bf16.msra.mxu0 0
    %453 = vmatprep.subr.bf16.mxu0 0
    %454 = vmatpush1.bf16.msra.mxu0 0
    %455 = vmatprep.subr.bf16.mxu0 0
    %456 = vmatpush1.bf16.msra.mxu0 0
    %457 = vmatprep.subr.bf16.mxu0 0
    %458 = vmatpush1.bf16.msra.mxu0 0
    %459 = vmatprep.subr.bf16.mxu0 0
    %460 = vmatpush1.bf16.msra.mxu0 0
    %461 = vmatprep.subr.bf16.mxu0 0
    %462 = vmatpush1.bf16.msra.mxu0 0
    %463 = vmatprep.subr.bf16.mxu0 0
    %464 = vmatpush1.bf16.msra.mxu0 0
    %465 = vmatprep.subr.bf16.mxu0 0
    %466 = vmatpush1.bf16.msra.mxu0 0
    %467 = vmatprep.mubr.bf16.mxu0 0
    %468 = vmatmul.mubr.bf16.gmra.mrb[0].mxu0 %v429
    %v469 = vpop.f32.mrb[0].mxu0
    %v470 = vadd.f32 0.0, %v469
    %v471 = vpop.f32.mrb[0].mxu0
    %v472 = vpop.f32.mrb[0].mxu0
    %v473 = vadd.f32 0.0, %v472
    %v474 = vpop.f32.mrb[0].mxu0
    %475 = vdwg.mxu0
    %v477 = vsel %vm180, %v299, 0
    %v480 = vsel %vm431, %v300, 0
    %482 = vmatprep.subr.bf16.mxu0 0
    %483 = vmatpush1.bf16.msra.mxu0 %v480
    %484 = vmatprep.subr.bf16.mxu0 0
    %485 = vmatpush1.bf16.msra.mxu0 0
    %486 = vmatprep.subr.bf16.mxu0 0
    %487 = vmatpush1.bf16.msra.mxu0 0
    %488 = vmatprep.subr.bf16.mxu0 0
    %489 = vmatpush1.bf16.msra.mxu0 0
    %490 = vmatprep.subr.bf16.mxu0 0
    %491 = vmatpush1.bf16.msra.mxu0 0
    %492 = vmatprep.subr.bf16.mxu0 0
    %493 = vmatpush1.bf16.msra.mxu0 0
    %494 = vmatprep.subr.bf16.mxu0 0
    %495 = vmatpush1.bf16.msra.mxu0 0
    %496 = vmatprep.subr.bf16.mxu0 0
    %497 = vmatpush1.bf16.msra.mxu0 0
    %498 = vmatprep.subr.bf16.mxu0 0
    %499 = vmatpush1.bf16.msra.mxu0 0
    %500 = vmatprep.subr.bf16.mxu0 0
    %501 = vmatpush1.bf16.msra.mxu0 0
    %502 = vmatprep.subr.bf16.mxu0 0
    %503 = vmatpush1.bf16.msra.mxu0 0
    %504 = vmatprep.subr.bf16.mxu0 0
    %505 = vmatpush1.bf16.msra.mxu0 0
    %506 = vmatprep.subr.bf16.mxu0 0
    %507 = vmatpush1.bf16.msra.mxu0 0
    %508 = vmatprep.subr.bf16.mxu0 0
    %509 = vmatpush1.bf16.msra.mxu0 0
    %510 = vmatprep.subr.bf16.mxu0 0
    %511 = vmatpush1.bf16.msra.mxu0 0
    %512 = vmatprep.subr.bf16.mxu0 0
    %513 = vmatpush1.bf16.msra.mxu0 0
    %514 = vmatprep.mubr.bf16.mxu0 0
    %515 = vmatmul.mubr.bf16.gmra.mrb[0].mxu0 %v477
    %v516 = vpop.f32.mrb[0].mxu0
    %v517 = vadd.f32 %v470, %v516
    %v518 = vpop.f32.mrb[0].mxu0
    %v519 = vpop.f32.mrb[0].mxu0
    %v520 = vadd.f32 %v473, %v519
    %v521 = vpop.f32.mrb[0].mxu0
    %522 = vdwg.mxu0
    %s523 = scalar_lea.vmem [#allocation7], 32
    %v524 = vld [vmem:[%s523] sm:$0xff]
    %v525 = vld [vmem:[%s523 + $0x8] sm:$0xff]
    %526 = vrot.lane.b32.xlu0 %v174, 112
    %v527 = vpop.permute.xlu0 %526
    %528 = vrot.lane.b32.xlu0 %v174, 80
    %v529 = vpop.permute.xlu0 %528
    %v531 = vsel %vm180, %v527, 0
    %v534 = vsel %vm180, %v529, 0
    %536 = vmatprep.subr.bf16.mxu0 0
    %537 = vmatpush1.bf16.xpose.msra.mxu0 %v534
    %538 = vmatprep.subr.bf16.mxu0 0
    %539 = vmatpush1.bf16.xpose.msra.mxu0 0
    %540 = vmatprep.subr.bf16.mxu0 0
    %541 = vmatpush1.bf16.xpose.msra.mxu0 0
    %542 = vmatprep.subr.bf16.mxu0 0
    %543 = vmatpush1.bf16.xpose.msra.mxu0 0
    %544 = vmatprep.subr.bf16.mxu0 0
    %545 = vmatpush1.bf16.xpose.msra.mxu0 0
    %546 = vmatprep.subr.bf16.mxu0 0
    %547 = vmatpush1.bf16.xpose.msra.mxu0 0
    %548 = vmatprep.subr.bf16.mxu0 0
    %549 = vmatpush1.bf16.xpose.msra.mxu0 0
    %550 = vmatprep.subr.bf16.mxu0 0
    %551 = vmatpush1.bf16.xpose.msra.mxu0 0
    %552 = vmatprep.subr.bf16.mxu0 0
    %553 = vmatpush1.bf16.xpose.msra.mxu0 0
    %554 = vmatprep.subr.bf16.mxu0 0
    %555 = vmatpush1.bf16.xpose.msra.mxu0 0
    %556 = vmatprep.subr.bf16.mxu0 0
    %557 = vmatpush1.bf16.xpose.msra.mxu0 0
    %558 = vmatprep.subr.bf16.mxu0 0
    %559 = vmatpush1.bf16.xpose.msra.mxu0 0
    %560 = vmatprep.subr.bf16.mxu0 0
    %561 = vmatpush1.bf16.xpose.msra.mxu0 0
    %562 = vmatprep.subr.bf16.mxu0 0
    %563 = vmatpush1.bf16.xpose.msra.mxu0 0
    %564 = vmatprep.subr.bf16.mxu0 0
    %565 = vmatpush1.bf16.xpose.msra.mxu0 0
    %566 = vmatprep.subr.bf16.mxu0 0
    %567 = vmatpush1.bf16.xpose.msra.mxu0 0
    %568 = vmatprep.mubr.bf16.mxu0 0
    %569 = vmatmul.mubr.bf16.gmra.mrb[0].mxu0 %v531
    %v570 = vpop.f32.mrb[0].mxu0
    %v571 = vadd.f32 %v524, %v570
    %v572 = vpop.f32.mrb[0].mxu0
    %v573 = vpop.f32.mrb[0].mxu0
    %v574 = vadd.f32 %v525, %v573
    %v575 = vpop.f32.mrb[0].mxu0
    %576 = vdwg.mxu0
    %v577 = vsel %vm228, %v571, -inf
    %578 = vmax.xlane.f32.xlu0 %v577
    %v579 = vpop.xlane.xlu0 %578
    %v580 = vsel %vm228, %v574, -inf
    %581 = vmax.xlane.f32.xlu0 %v580
    %v582 = vpop.xlane.xlu0 %581
    %v583 = vsub.f32 %v571, %v579
    %v584 = vsub.f32 %v574, %v582
    %v585 = vmul.f32 %v583, 1.442695
    %v586 = vpow.pop %v585
    %v587 = vmul.f32 %v584, 1.442695
    %v588 = vpow.pop %v587
    %v589 = vsel %vm228, %v586, 0.0
    %590 = vadd.xlane.f32.xlu0 %v589
    %v591 = vpop.xlane.xlu0 %590
    %v592 = vsel %vm228, %v588, 0.0
    %593 = vadd.xlane.f32.xlu0 %v592
    %v594 = vpop.xlane.xlu0 %593
    %v595 = vrcp.pop %v591
    %v596 = vrcp.pop %v594
    %v597 = vmul.f32 %v586, %v595
    %v598 = vmul.f32 %v588, %v596
    %v599 = vpack.c.bf16 %v598, %v597
    %600 = vrot.lane.b32.xlu0 %v174, 48
    %v601 = vpop.permute.xlu0 %600
    %v604 = vsel %vm228, %v599, 0
    %606 = vmatprep.subr.bf16.mxu0 0
    %607 = vmatpush1.bf16.msra.mxu0 %v601
    %608 = vmatprep.subr.bf16.mxu0 0
    %609 = vmatpush1.bf16.msra.mxu0 0
    %610 = vmatprep.subr.bf16.mxu0 0
    %611 = vmatpush1.bf16.msra.mxu0 0
    %612 = vmatprep.subr.bf16.mxu0 0
    %613 = vmatpush1.bf16.msra.mxu0 0
    %614 = vmatprep.subr.bf16.mxu0 0
    %615 = vmatpush1.bf16.msra.mxu0 0
    %616 = vmatprep.subr.bf16.mxu0 0
    %617 = vmatpush1.bf16.msra.mxu0 0
    %618 = vmatprep.subr.bf16.mxu0 0
    %619 = vmatpush1.bf16.msra.mxu0 0
    %620 = vmatprep.subr.bf16.mxu0 0
    %621 = vmatpush1.bf16.msra.mxu0 0
    %622 = vmatprep.subr.bf16.mxu0 0
    %623 = vmatpush1.bf16.msra.mxu0 0
    %624 = vmatprep.subr.bf16.mxu0 0
    %625 = vmatpush1.bf16.msra.mxu0 0
    %626 = vmatprep.subr.bf16.mxu0 0
    %627 = vmatpush1.bf16.msra.mxu0 0
    %628 = vmatprep.subr.bf16.mxu0 0
    %629 = vmatpush1.bf16.msra.mxu0 0
    %630 = vmatprep.subr.bf16.mxu0 0
    %631 = vmatpush1.bf16.msra.mxu0 0
    %632 = vmatprep.subr.bf16.mxu0 0
    %633 = vmatpush1.bf16.msra.mxu0 0
    %634 = vmatprep.subr.bf16.mxu0 0
    %635 = vmatpush1.bf16.msra.mxu0 0
    %636 = vmatprep.subr.bf16.mxu0 0
    %637 = vmatpush1.bf16.msra.mxu0 0
    %638 = vmatprep.mubr.bf16.mxu0 0
    %639 = vmatmul.mubr.bf16.gmra.mrb[0].mxu0 %v604
    %v640 = vpop.f32.mrb[0].mxu0
    %v641 = vadd.f32 0.0, %v640
    %v642 = vpop.f32.mrb[0].mxu0
    %v643 = vpop.f32.mrb[0].mxu0
    %v644 = vadd.f32 0.0, %v643
    %v645 = vpop.f32.mrb[0].mxu0
    %646 = vdwg.mxu0
    %v647 = vpack.c.bf16 %v644, %v641
    %s648 = scalar_lea.vmem [#allocation6], 8
    %v649 = vld [vmem:[%s648] sm:$0xf]
    %v651 = vsel %vm180, %v647, 0
    %v654 = vsel %vm431, %v649, 0
    %656 = vmatprep.subr.bf16.mxu0 0
    %657 = vmatpush1.bf16.msra.mxu0 %v654
    %658 = vmatprep.subr.bf16.mxu0 0
    %659 = vmatpush1.bf16.msra.mxu0 0
    %660 = vmatprep.subr.bf16.mxu0 0
    %661 = vmatpush1.bf16.msra.mxu0 0
    %662 = vmatprep.subr.bf16.mxu0 0
    %663 = vmatpush1.bf16.msra.mxu0 0
    %664 = vmatprep.subr.bf16.mxu0 0
    %665 = vmatpush1.bf16.msra.mxu0 0
    %666 = vmatprep.subr.bf16.mxu0 0
    %667 = vmatpush1.bf16.msra.mxu0 0
    %668 = vmatprep.subr.bf16.mxu0 0
    %669 = vmatpush1.bf16.msra.mxu0 0
    %670 = vmatprep.subr.bf16.mxu0 0
    %671 = vmatpush1.bf16.msra.mxu0 0
    %672 = vmatprep.subr.bf16.mxu0 0
    %673 = vmatpush1.bf16.msra.mxu0 0
    %674 = vmatprep.subr.bf16.mxu0 0
    %675 = vmatpush1.bf16.msra.mxu0 0
    %676 = vmatprep.subr.bf16.mxu0 0
    %677 = vmatpush1.bf16.msra.mxu0 0
    %678 = vmatprep.subr.bf16.mxu0 0
    %679 = vmatpush1.bf16.msra.mxu0 0
    %680 = vmatprep.subr.bf16.mxu0 0
    %681 = vmatpush1.bf16.msra.mxu0 0
    %682 = vmatprep.subr.bf16.mxu0 0
    %683 = vmatpush1.bf16.msra.mxu0 0
    %684 = vmatprep.subr.bf16.mxu0 0
    %685 = vmatpush1.bf16.msra.mxu0 0
    %686 = vmatprep.subr.bf16.mxu0 0
    %687 = vmatpush1.bf16.msra.mxu0 0
    %688 = vmatprep.mubr.bf16.mxu0 0
    %689 = vmatmul.mubr.bf16.gmra.mrb[0].mxu0 %v651
    %v690 = vpop.f32.mrb[0].mxu0
    %v691 = vadd.f32 0.0, %v690
    %v692 = vpop.f32.mrb[0].mxu0
    %v693 = vpop.f32.mrb[0].mxu0
    %v694 = vadd.f32 0.0, %v693
    %v695 = vpop.f32.mrb[0].mxu0
    %696 = vdwg.mxu0
    %v697 = vadd.f32 %v517, %v691
    %v698 = vadd.f32 %v520, %v694
    %s699 = scalar_lea.vmem [#allocation7], 48
    %v700 = vld [vmem:[%s699] sm:$0xff]
    %v701 = vld [vmem:[%s699 + $0x8] sm:$0xff]
    %702 = vrot.lane.b32.xlu0 %v174, 104
    %v703 = vpop.permute.xlu0 %702
    %704 = vrot.lane.b32.xlu0 %v174, 72
    %v705 = vpop.permute.xlu0 %704
    %v707 = vsel %vm180, %v703, 0
    %v710 = vsel %vm180, %v705, 0
    %712 = vmatprep.subr.bf16.mxu0 0
    %713 = vmatpush1.bf16.xpose.msra.mxu0 %v710
    %714 = vmatprep.subr.bf16.mxu0 0
    %715 = vmatpush1.bf16.xpose.msra.mxu0 0
    %716 = vmatprep.subr.bf16.mxu0 0
    %717 = vmatpush1.bf16.xpose.msra.mxu0 0
    %718 = vmatprep.subr.bf16.mxu0 0
    %719 = vmatpush1.bf16.xpose.msra.mxu0 0
    %720 = vmatprep.subr.bf16.mxu0 0
    %721 = vmatpush1.bf16.xpose.msra.mxu0 0
    %722 = vmatprep.subr.bf16.mxu0 0
    %723 = vmatpush1.bf16.xpose.msra.mxu0 0
    %724 = vmatprep.subr.bf16.mxu0 0
    %725 = vmatpush1.bf16.xpose.msra.mxu0 0
    %726 = vmatprep.subr.bf16.mxu0 0
    %727 = vmatpush1.bf16.xpose.msra.mxu0 0
    %728 = vmatprep.subr.bf16.mxu0 0
    %729 = vmatpush1.bf16.xpose.msra.mxu0 0
    %730 = vmatprep.subr.bf16.mxu0 0
    %731 = vmatpush1.bf16.xpose.msra.mxu0 0
    %732 = vmatprep.subr.bf16.mxu0 0
    %733 = vmatpush1.bf16.xpose.msra.mxu0 0
    %734 = vmatprep.subr.bf16.mxu0 0
    %735 = vmatpush1.bf16.xpose.msra.mxu0 0
    %736 = vmatprep.subr.bf16.mxu0 0
    %737 = vmatpush1.bf16.xpose.msra.mxu0 0
    %738 = vmatprep.subr.bf16.mxu0 0
    %739 = vmatpush1.bf16.xpose.msra.mxu0 0
    %740 = vmatprep.subr.bf16.mxu0 0
    %741 = vmatpush1.bf16.xpose.msra.mxu0 0
    %742 = vmatprep.subr.bf16.mxu0 0
    %743 = vmatpush1.bf16.xpose.msra.mxu0 0
    %744 = vmatprep.mubr.bf16.mxu0 0
    %745 = vmatmul.mubr.bf16.gmra.mrb[0].mxu0 %v707
    %v746 = vpop.f32.mrb[0].mxu0
    %v747 = vadd.f32 %v700, %v746
    %v748 = vpop.f32.mrb[0].mxu0
    %v749 = vpop.f32.mrb[0].mxu0
    %v750 = vadd.f32 %v701, %v749
    %v751 = vpop.f32.mrb[0].mxu0
    %752 = vdwg.mxu0
    %v753 = vsel %vm228, %v747, -inf
    %754 = vmax.xlane.f32.xlu0 %v753
    %v755 = vpop.xlane.xlu0 %754
    %v756 = vsel %vm228, %v750, -inf
    %757 = vmax.xlane.f32.xlu0 %v756
    %v758 = vpop.xlane.xlu0 %757
    %v759 = vsub.f32 %v747, %v755
    %v760 = vsub.f32 %v750, %v758
    %v761 = vmul.f32 %v759, 1.442695
    %v762 = vpow.pop %v761
    %v763 = vmul.f32 %v760, 1.442695
    %v764 = vpow.pop %v763
    %v765 = vsel %vm228, %v762, 0.0
    %766 = vadd.xlane.f32.xlu0 %v765
    %v767 = vpop.xlane.xlu0 %766
    %v768 = vsel %vm228, %v764, 0.0
    %769 = vadd.xlane.f32.xlu0 %v768
    %v770 = vpop.xlane.xlu0 %769
    %v771 = vrcp.pop %v767
    %v772 = vrcp.pop %v770
    %v773 = vmul.f32 %v762, %v771
    %v774 = vmul.f32 %v764, %v772
    %v775 = vpack.c.bf16 %v774, %v773
    %776 = vrot.lane.b32.xlu0 %v174, 40
    %v777 = vpop.permute.xlu0 %776
    %v780 = vsel %vm228, %v775, 0
    %782 = vmatprep.subr.bf16.mxu0 0
    %783 = vmatpush1.bf16.msra.mxu0 %v777
    %784 = vmatprep.subr.bf16.mxu0 0
    %785 = vmatpush1.bf16.msra.mxu0 0
    %786 = vmatprep.subr.bf16.mxu0 0
    %787 = vmatpush1.bf16.msra.mxu0 0
    %788 = vmatprep.subr.bf16.mxu0 0
    %789 = vmatpush1.bf16.msra.mxu0 0
    %790 = vmatprep.subr.bf16.mxu0 0
    %791 = vmatpush1.bf16.msra.mxu0 0
    %792 = vmatprep.subr.bf16.mxu0 0
    %793 = vmatpush1.bf16.msra.mxu0 0
    %794 = vmatprep.subr.bf16.mxu0 0
    %795 = vmatpush1.bf16.msra.mxu0 0
    %796 = vmatprep.subr.bf16.mxu0 0
    %797 = vmatpush1.bf16.msra.mxu0 0
    %798 = vmatprep.subr.bf16.mxu0 0
    %799 = vmatpush1.bf16.msra.mxu0 0
    %800 = vmatprep.subr.bf16.mxu0 0
    %801 = vmatpush1.bf16.msra.mxu0 0
    %802 = vmatprep.subr.bf16.mxu0 0
    %803 = vmatpush1.bf16.msra.mxu0 0
    %804 = vmatprep.subr.bf16.mxu0 0
    %805 = vmatpush1.bf16.msra.mxu0 0
    %806 = vmatprep.subr.bf16.mxu0 0
    %807 = vmatpush1.bf16.msra.mxu0 0
    %808 = vmatprep.subr.bf16.mxu0 0
    %809 = vmatpush1.bf16.msra.mxu0 0
    %810 = vmatprep.subr.bf16.mxu0 0
    %811 = vmatpush1.bf16.msra.mxu0 0
    %812 = vmatprep.subr.bf16.mxu0 0
    %813 = vmatpush1.bf16.msra.mxu0 0
    %814 = vmatprep.mubr.bf16.mxu0 0
    %815 = vmatmul.mubr.bf16.gmra.mrb[0].mxu0 %v780
    %v816 = vpop.f32.mrb[0].mxu0
    %v817 = vadd.f32 0.0, %v816
    %v818 = vpop.f32.mrb[0].mxu0
    %v819 = vpop.f32.mrb[0].mxu0
    %v820 = vadd.f32 0.0, %v819
    %v821 = vpop.f32.mrb[0].mxu0
    %822 = vdwg.mxu0
    %v823 = vpack.c.bf16 %v820, %v817
    %s824 = scalar_lea.vmem [#allocation6], 12
    %v825 = vld [vmem:[%s824] sm:$0xf]
    %v827 = vsel %vm180, %v823, 0
    %v830 = vsel %vm431, %v825, 0
    %832 = vmatprep.subr.bf16.mxu0 0
    %833 = vmatpush1.bf16.msra.mxu0 %v830
    %834 = vmatprep.subr.bf16.mxu0 0
    %835 = vmatpush1.bf16.msra.mxu0 0
    %836 = vmatprep.subr.bf16.mxu0 0
    %837 = vmatpush1.bf16.msra.mxu0 0
    %838 = vmatprep.subr.bf16.mxu0 0
    %839 = vmatpush1.bf16.msra.mxu0 0
    %840 = vmatprep.subr.bf16.mxu0 0
    %841 = vmatpush1.bf16.msra.mxu0 0
    %842 = vmatprep.subr.bf16.mxu0 0
    %843 = vmatpush1.bf16.msra.mxu0 0
    %844 = vmatprep.subr.bf16.mxu0 0
    %845 = vmatpush1.bf16.msra.mxu0 0
    %846 = vmatprep.subr.bf16.mxu0 0
    %847 = vmatpush1.bf16.msra.mxu0 0
    %848 = vmatprep.subr.bf16.mxu0 0
    %849 = vmatpush1.bf16.msra.mxu0 0
    %850 = vmatprep.subr.bf16.mxu0 0
    %851 = vmatpush1.bf16.msra.mxu0 0
    %852 = vmatprep.subr.bf16.mxu0 0
    %853 = vmatpush1.bf16.msra.mxu0 0
    %854 = vmatprep.subr.bf16.mxu0 0
    %855 = vmatpush1.bf16.msra.mxu0 0
    %856 = vmatprep.subr.bf16.mxu0 0
    %857 = vmatpush1.bf16.msra.mxu0 0
    %858 = vmatprep.subr.bf16.mxu0 0
    %859 = vmatpush1.bf16.msra.mxu0 0
    %860 = vmatprep.subr.bf16.mxu0 0
    %861 = vmatpush1.bf16.msra.mxu0 0
    %862 = vmatprep.subr.bf16.mxu0 0
    %863 = vmatpush1.bf16.msra.mxu0 0
    %864 = vmatprep.mubr.bf16.mxu0 0
    %865 = vmatmul.mubr.bf16.gmra.mrb[0].mxu0 %v827
    %v866 = vpop.f32.mrb[0].mxu0
    %v867 = vadd.f32 0.0, %v866
    %v868 = vpop.f32.mrb[0].mxu0
    %v869 = vpop.f32.mrb[0].mxu0
    %v870 = vadd.f32 0.0, %v869
    %v871 = vpop.f32.mrb[0].mxu0
    %872 = vdwg.mxu0
    %v873 = vadd.f32 %v697, %v867
    %v874 = vadd.f32 %v698, %v870
    %875 = vst [vmem:[%s5] sm:$0xff] %v873
    %876 = vst [vmem:[%s5 + $0x8] sm:$0xff] %v874
    // Predicated region
    $region38: #{attention_forward.1} parent=1 // pred_check
      _
    $region39: #{attention_forward.1} parent=1 // pred_check_branch
      %878 = sbr.rel (0) target = $region41
    $region40: #{attention_forward.1} parent=1 // pred_region
      _
    $region41: #{attention_forward.1} parent=1 // pred_fallthru
      _
    // Predicated region
    $region42: #{attention_forward.1} parent=1 // pred_check
      _
    $region43: #{attention_forward.1} parent=1 // pred_check_branch
      %880 = sbr.rel (0) target = $region45
    $region44: #{attention_forward.1} parent=1 // pred_region
      _
    $region45: #{attention_forward.1} parent=1 // pred_fallthru
      _
    %881 = vsyncpa [#allocation3], 1
    %882 = vsyncpa [#allocation5], 1
    %883 = vsyncpa [#allocation8], 1

</llo_original>
